<compile_context>
chip_gen: v5e
topology: v5e:2x2
jax: 0.10.0
libtpu: 0.0.40
codegen_flags: <defaults>
</compile_context>

<pallas_src>
import math

import jax
import jax.numpy as jnp
from jax.experimental import pallas as pl
from jax.experimental.pallas import tpu as pltpu


def _log_softmax_last(x):
    m = jnp.max(x, axis=-1, keepdims=True)
    s = x - m
    return s - jnp.log(jnp.sum(jnp.exp(s), axis=-1, keepdims=True))


def _round_up(x, m):
    return ((x + m - 1) // m) * m


# ---------------------------------------------------------------------------
# Kernel A: small-D (D < 128) fused path.
# One packed (tile, 3D) input stream, one block-diagonal (3D,3D) MXU pass for
# linear1..3, segmented log-softmax via a 0/1 indicator matmul, linear4 as a
# single (3D,D) matmul, and ONE lane-dense (tile, 4D) output store.
# ---------------------------------------------------------------------------
def _consists_kernel_fused(z_ref, w123_ref, b123_ref, ind_ref, w4p_ref, b4_ref,
                           out_ref):
    z = z_ref[...]                                                # (tile, 3D)
    h = jnp.tanh(jnp.dot(z, w123_ref[...],
                         preferred_element_type=jnp.float32) + b123_ref[...])
    # Segmented log-softmax over each D-wide lane segment.  tanh output is
    # bounded in [-1, 1], so one global row max keeps exp() safe, and the
    # per-segment sums are recovered with one (3D,3D) 0/1 indicator matmul
    # (MXU has plenty of slack; avoids sub-128-lane slicing inside the loop).
    m = jnp.max(h, axis=-1, keepdims=True)
    e = jnp.exp(h - m)
    seg_sum = jnp.dot(e, ind_ref[...], preferred_element_type=jnp.float32)
    x = (h - m) - jnp.log(seg_sum)                                # [xt | xf | xc]

    # [Ztc|Zfc] @ W4^T == (xt*Zt)@W4a + (xf*Zf)@W4b + (xc*Zc)@(W4a+W4b),
    # realized as a single matmul against the pre-packed (3D, D) weight.
    prod = (x * z.astype(jnp.float32)).astype(w4p_ref.dtype)
    logits = jnp.dot(prod, w4p_ref[...],
                     preferred_element_type=jnp.float32) + b4_ref[...]
    l = _log_softmax_last(logits)

    # Single lane-dense store: [at | af | ac | L]  (128 lanes at D=32).
    out_ref[...] = jnp.concatenate([x, l], axis=-1)


# ---------------------------------------------------------------------------
# Kernel B: large-D (D >= 128) path.  Each stream is already lane-dense;
# weights arrive pre-transposed in (in, out) layout, W4 pre-split in halves.
# ---------------------------------------------------------------------------
def _consists_kernel_split(zt_ref, zf_ref, zc_ref,
                           w1_ref, b1_ref, w2_ref, b2_ref, w3_ref, b3_ref,
                           w4a_ref, w4b_ref, b4_ref,
                           l_ref, at_ref, af_ref, ac_ref):
    zt = zt_ref[...]
    zf = zf_ref[...]
    zc = zc_ref[...]

    def branch(z, w_ref, b_ref):
        h = jnp.dot(z, w_ref[...], preferred_element_type=jnp.float32) + b_ref[...]
        return _log_softmax_last(jnp.tanh(h))

    xt = branch(zt, w1_ref, b1_ref)
    xf = branch(zf, w2_ref, b2_ref)
    xc = branch(zc, w3_ref, b3_ref)

    at_ref[...] = xt
    af_ref[...] = xf
    ac_ref[...] = xc              # ac1 == ac2 in the reference; stored once.

    xcm = xc * zc.astype(jnp.float32)
    ztc = (xt * zt.astype(jnp.float32) + xcm).astype(w4a_ref.dtype)
    zfc = (xf * zf.astype(jnp.float32) + xcm).astype(w4a_ref.dtype)
    logits = (jnp.dot(ztc, w4a_ref[...], preferred_element_type=jnp.float32)
              + jnp.dot(zfc, w4b_ref[...], preferred_element_type=jnp.float32)
              + b4_ref[...])
    l_ref[...] = _log_softmax_last(logits)


# ---------------------------------------------------------------------------
# One-time parameter preparation (hoisted out of the forward path).
# ---------------------------------------------------------------------------
def prepare_consists_params(params, *, compute_dtype=jnp.float32,
                            fuse_small_d=True):
    """Pack / transpose / cast the Linear weights once; reuse per forward call.

    `params` are PyTorch-layout tensors: W* of shape (out, in), b* of shape (out,).
    """
    W1, b1, W2, b2, W3, b3, W4, b4 = params
    D = W1.shape[0]
    assert W1.shape == (D, D) and W2.shape == (D, D) and W3.shape == (D, D)
    assert W4.shape == (D, 2 * D), "linear4 acts on cat((Ztc, Zfc), -1)"
    cd = jnp.dtype(compute_dtype)

    # (in, out) layout so kernels contract (1,0): no per-step RHS transpose.
    W1t, W2t, W3t = (jnp.asarray(W, jnp.float32).T for W in (W1, W2, W3))
    W4t = jnp.asarray(W4, jnp.float32).T                 # (2D, D)
    W4a, W4b = W4t[:D], W4t[D:]

    b1r, b2r, b3r, b4r = (jnp.asarray(b, jnp.float32).reshape(1, -1)
                          for b in (b1, b2, b3, b4))

    prepared = {"d": D, "compute_dtype": cd,
                "fused": bool(fuse_small_d and D < 128)}
    if prepared["fused"]:
        # Block-diagonal (3D, 3D) weight: linear1..3 in one MXU pass.
        W123 = jnp.zeros((3 * D, 3 * D), jnp.float32)
        W123 = W123.at[:D, :D].set(W1t)
        W123 = W123.at[D:2 * D, D:2 * D].set(W2t)
        W123 = W123.at[2 * D:, 2 * D:].set(W3t)
        b123 = jnp.concatenate([b1r, b2r, b3r], axis=-1)          # (1, 3D)
        # linear4 folded to a single (3D, D) weight (see kernel comment).
        W4p = jnp.concatenate([W4a, W4b, W4a + W4b], axis=0)      # (3D, D)
        # 0/1 segment-indicator matrix for the segmented softmax sums.
        seg = jnp.arange(3 * D) // D
        ind = (seg[:, None] == seg[None, :]).astype(jnp.float32)
        prepared["weights"] = (W123.astype(cd), b123, ind, W4p.astype(cd), b4r)
    else:
        prepared["weights"] = (W1t.astype(cd), b1r, W2t.astype(cd), b2r,
                               W3t.astype(cd), b3r,
                               W4a.astype(cd), W4b.astype(cd), b4r)
    return prepared


def _choose_tile_n(n, d, cd_itemsize, fused, max_tile_n):
    """Row tile: large (amortize per-step overhead, HBM efficiency), clamped by
    a VMEM budget, multiple of 8, and small enough for >= 2 grid steps."""
    if max_tile_n is None:
        max_tile_n = 1024
    if fused:       # double-buffered in/out blocks + f32 intermediates
        per_row = 3 * d * cd_itemsize * 2 + 4 * d * 4 * 2 + 7 * 3 * d * 4
    else:
        per_row = 3 * d * cd_itemsize * 2 + 4 * d * 4 * 2 + 8 * d * 4
    act_budget = 12 << 20
    tile = min(max_tile_n, max(8, act_budget // max(per_row, 1)))
    tile = max(8, (tile // 8) * 8)
    if n >= 16:                     # >= 2 grid steps keeps both v7x TCs busy
        tile = min(tile, _round_up((n + 1) // 2, 8))
    tile = min(tile, _round_up(n, 8))
    return max(8, (tile // 8) * 8)


def consists_forward(Zt, Zf, Zc, prepared, *, max_tile_n=None,
                     single_buffer_weights=True):
    N, D = Zt.shape
    assert Zf.shape == (N, D) and Zc.shape == (N, D)
    assert prepared["d"] == D
    cd = prepared["compute_dtype"]
    fused = prepared["fused"]
    weights = prepared["weights"]

    tile_n = _choose_tile_n(N, D, cd.itemsize, fused, max_tile_n)
    padded_n = _round_up(N, tile_n)
    grid = (padded_n // tile_n,)
    pad = padded_n - N

    def pad_rows(x):
        return jnp.pad(x, ((0, pad), (0, 0))) if pad else x

    # VMEM budget: block DMA buffers + resident weights + f32 intermediates.
    weight_bytes = sum(int(w.size) * w.dtype.itemsize for w in weights)
    if fused:
        act_bytes = tile_n * (3 * D * cd.itemsize * 2 + 4 * D * 4 * 2 + 7 * 3 * D * 4)
    else:
        act_bytes = tile_n * (3 * D * cd.itemsize * 2 + 4 * D * 4 * 2 + 8 * D * 4)
    vmem_est = act_bytes + 2 * weight_bytes          # conservative (double-buffered)
    try:
        vmem_cap = int(pltpu.get_tpu_info().vmem_capacity_bytes)
    except Exception:                                # noqa: BLE001 - best effort
        vmem_cap = 64 << 20                          # assume smallest (v7x)
    vmem_limit = max(32 << 20, int(1.5 * vmem_est) + (2 << 20))
    vmem_limit = min(vmem_limit, int(0.75 * vmem_cap))   # leave compiler headroom

    cparams = pltpu.CompilerParams(dimension_semantics=("parallel",),
                                   vmem_limit_bytes=int(vmem_limit))

    row_spec_3d = pl.BlockSpec((tile_n, 3 * D), lambda i: (i, 0))
    row_spec_d = pl.BlockSpec((tile_n, D), lambda i: (i, 0))
    out_slab_spec = pl.BlockSpec((tile_n, 4 * D), lambda i: (i, 0))

    def build(single_buffer):
        def const_spec(shape):
            if single_buffer:
                return pl.BlockSpec(shape, lambda i: (0, 0),
                                    pipeline_mode=pl.Buffered(1))
            return pl.BlockSpec(shape, lambda i: (0, 0))

        if fused:
            in_specs = [row_spec_3d] + [const_spec(w.shape) for w in weights]
            out_shape = jax.ShapeDtypeStruct((padded_n, 4 * D), jnp.float32)
            out_specs = out_slab_spec
            kernel = _consists_kernel_fused
        else:
            in_specs = [row_spec_d] * 3 + [const_spec(w.shape) for w in weights]
            out_shape = tuple(jax.ShapeDtypeStruct((padded_n, D), jnp.float32)
                              for _ in range(4))
            out_specs = [row_spec_d] * 4
            kernel = _consists_kernel_split
        return pl.pallas_call(
            kernel,
            out_shape=out_shape,
            grid_spec=pltpu.PrefetchScalarGridSpec(
                num_scalar_prefetch=0, grid=grid,
                in_specs=in_specs, out_specs=out_specs),
            compiler_params=cparams,
        )

    if fused:
        zpack = pad_rows(jnp.concatenate([Zt, Zf, Zc], axis=-1).astype(cd))
        inputs = (zpack,) + tuple(weights)
    else:
        inputs = (pad_rows(Zt.astype(cd)), pad_rows(Zf.astype(cd)),
                  pad_rows(Zc.astype(cd))) + tuple(weights)

    try:
        outs = build(single_buffer_weights)(*inputs)
    except Exception:   # pragma: no cover - fallback if pl.Buffered(1) unsupported
        if not single_buffer_weights:
            raise
        outs = build(False)(*inputs)

    if fused:
        slab = outs
        at = slab[:N, :D]
        af = slab[:N, D:2 * D]
        ac = slab[:N, 2 * D:3 * D]
        L = slab[:N, 3 * D:]
    else:
        L, at, af, ac = (o[:N] for o in outs)
    # ac1 and ac2 of the reference are bit-identical; computed/stored once.
    # TODO(synk): optionally offer bf16 output dtypes when downstream tolerates it.
    return (L, at, af, ac, ac)


# ---------------------------------------------------------------------------
# PyTorch-style init and a pure-JAX reference for validation.
# ---------------------------------------------------------------------------
def init_params(key, nhid2):
    keys = jax.random.split(key, 8)

    def lin(kw, kb, fan_in, fan_out):
        bound = 1.0 / math.sqrt(fan_in)
        W = jax.random.uniform(kw, (fan_out, fan_in), jnp.float32, -bound, bound)
        b = jax.random.uniform(kb, (fan_out,), jnp.float32, -bound, bound)
        return W, b

    W1, b1 = lin(keys[0], keys[1], nhid2, nhid2)
    W2, b2 = lin(keys[2], keys[3], nhid2, nhid2)
    W3, b3 = lin(keys[4], keys[5], nhid2, nhid2)
    W4, b4 = lin(keys[6], keys[7], 2 * nhid2, nhid2)   # see TODO(synk) above
    return (W1, b1, W2, b2, W3, b3, W4, b4)


def consists_reference(Zt, Zf, Zc, params):
    W1, b1, W2, b2, W3, b3, W4, b4 = params
    ls = lambda x: jax.nn.log_softmax(x, axis=1)
    xt = ls(jnp.tanh(Zt @ W1.T + b1)); at = xt; xt = xt * Zt
    xf = ls(jnp.tanh(Zf @ W2.T + b2)); af = xf; xf = xf * Zf
    xc = ls(jnp.tanh(Zc @ W3.T + b3)); ac1 = xc; ac2 = xc
    xc1 = xc * Zc; xc2 = xc * Zc
    Z = jnp.concatenate([xt + xc1, xf + xc2], axis=-1)
    L = ls(Z @ W4.T + b4)
    return (L, at, af, ac1, ac2)


if __name__ == "__main__":
    key = jax.random.PRNGKey(0)

    def make_case(k, N, D):
        k_zt, k_zf, k_zc, k_p = jax.random.split(k, 4)
        Zt = jax.random.normal(k_zt, (N, D), jnp.float32)
        Zf = jax.random.normal(k_zf, (N, D), jnp.float32)
        Zc = jax.random.normal(k_zc, (N, D), jnp.float32)
        return Zt, Zf, Zc, init_params(k_p, D)

    k1, k2, k3 = jax.random.split(key, 3)

    # 1) module-sized demo (nhid2=32): fused small-D kernel, lane-dense 128-wide
    #    packed output slab, 2 grid steps.
    Zt, Zf, Zc, params = make_case(k1, 16, 32)
    prepared = prepare_consists_params(params)
    outs = jax.block_until_ready(consists_forward(Zt, Zf, Zc, prepared))
    refs = consists_reference(Zt, Zf, Zc, params)
    for o, r in zip(outs, refs):
        assert o.shape == r.shape and o.dtype == r.dtype
        assert float(jnp.max(jnp.abs(o - r))) < 1e-4

    # 1b) bf16 MXU operands (v6e/v7x fast path), explicit opt-in; f32
    #     accumulation + f32 softmax, so only operand rounding differs.
    prepared_bf16 = prepare_consists_params(params, compute_dtype=jnp.bfloat16)
    outs_bf16 = jax.block_until_ready(consists_forward(Zt, Zf, Zc, prepared_bf16))
    for o, r in zip(outs_bf16, refs):
        assert float(jnp.max(jnp.abs(o - r))) < 0.25

    # 2) ragged N (not a multiple of 8): padded cdiv grid, rows sliced back.
    Zt3, Zf3, Zc3, params3 = make_case(k3, 50, 32)
    prepared3 = prepare_consists_params(params3)
    outs3 = jax.block_until_ready(consists_forward(Zt3, Zf3, Zc3, prepared3))
    refs3 = consists_reference(Zt3, Zf3, Zc3, params3)
    for o, r in zip(outs3, refs3):
        assert o.shape == r.shape
        assert float(jnp.max(jnp.abs(o - r))) < 1e-4

    # 3) D=128 exercises the split kernel (lane-dense per-branch streams),
    #    2 grid steps of 128 rows.
    Zt2, Zf2, Zc2, params2 = make_case(k2, 256, 128)
    prepared2 = prepare_consists_params(params2)
    outs2 = jax.block_until_ready(consists_forward(Zt2, Zf2, Zc2, prepared2))
    refs2 = consists_reference(Zt2, Zf2, Zc2, params2)
    for o, r in zip(outs2, refs2):
        assert o.shape == r.shape and o.dtype == r.dtype
        assert float(jnp.max(jnp.abs(o - r))) < 1e-3

    print("KERNEL_OK")
</pallas_src>

<mosaic_0001>
module attributes {stable_mosaic.version = 11 : i64} {
  func.func @_consists_kernel_fused(%arg0: i32, %arg1: memref<8x96xf32, #tpu.memory_space<vmem>>, %arg2: memref<96x96xf32, #tpu.memory_space<vmem>>, %arg3: memref<1x96xf32, #tpu.memory_space<vmem>>, %arg4: memref<96x96xf32, #tpu.memory_space<vmem>>, %arg5: memref<96x32xf32, #tpu.memory_space<vmem>>, %arg6: memref<1x32xf32, #tpu.memory_space<vmem>>, %arg7: memref<8x128xf32, #tpu.memory_space<vmem>>) attributes {dimension_semantics = [#tpu.dimension_semantics<parallel>], iteration_bounds = array<i64: 2>, scalar_prefetch = 0 : i64, scratch_operands = 0 : i64, tpu.core_type = #tpu.core_type<tc>, window_params = [{transform_indices = @transform_0, window_bounds = array<i64: 8, 96>}, {pipeline_mode = #tpu.pipeline_mode<synchronous>, transform_indices = @transform_1, window_bounds = array<i64: 96, 96>}, {pipeline_mode = #tpu.pipeline_mode<synchronous>, transform_indices = @transform_2, window_bounds = array<i64: 1, 96>}, {pipeline_mode = #tpu.pipeline_mode<synchronous>, transform_indices = @transform_3, window_bounds = array<i64: 96, 96>}, {pipeline_mode = #tpu.pipeline_mode<synchronous>, transform_indices = @transform_4, window_bounds = array<i64: 96, 32>}, {pipeline_mode = #tpu.pipeline_mode<synchronous>, transform_indices = @transform_5, window_bounds = array<i64: 1, 32>}, {transform_indices = @transform_6, window_bounds = array<i64: 8, 128>}]} {
    %c0 = arith.constant 0 : index
    %c0_0 = arith.constant 0 : index
    %0 = vector.load %arg1[%c0, %c0_0] : memref<8x96xf32, #tpu.memory_space<vmem>>, vector<8x96xf32>
    %c0_1 = arith.constant 0 : index
    %c0_2 = arith.constant 0 : index
    %1 = vector.load %arg2[%c0_1, %c0_2] : memref<96x96xf32, #tpu.memory_space<vmem>>, vector<96x96xf32>
    %cst = arith.constant dense<0.000000e+00> : vector<8x96xf32>
    %2 = tpu.matmul %0, %1, %cst {dimension_numbers = #tpu.dot_dimension_numbers<[1], [0], [0], [1], [0, 0, 1, 1], [], []>} : vector<8x96xf32>, vector<96x96xf32>, vector<8x96xf32> -> vector<8x96xf32>
    %c0_3 = arith.constant 0 : index
    %c0_4 = arith.constant 0 : index
    %3 = vector.load %arg3[%c0_3, %c0_4] : memref<1x96xf32, #tpu.memory_space<vmem>>, vector<1x96xf32>
    %4 = vector.broadcast %3 : vector<1x96xf32> to vector<8x96xf32>
    %5 = arith.addf %2, %4 : vector<8x96xf32>
    %6 = math.tanh %5 : vector<8x96xf32>
    %cst_5 = arith.constant dense<0xFF800000> : vector<8xf32>
    %7 = vector.multi_reduction <maximumf>, %6, %cst_5 [1] : vector<8x96xf32> to vector<8xf32>
    %8 = vector.shape_cast %7 : vector<8xf32> to vector<8x1xf32>
    %9 = vector.broadcast %8 : vector<8x1xf32> to vector<8x96xf32>
    %10 = arith.subf %6, %9 : vector<8x96xf32>
    %11 = math.exp %10 : vector<8x96xf32>
    %c0_6 = arith.constant 0 : index
    %c0_7 = arith.constant 0 : index
    %12 = vector.load %arg4[%c0_6, %c0_7] : memref<96x96xf32, #tpu.memory_space<vmem>>, vector<96x96xf32>
    %cst_8 = arith.constant dense<0.000000e+00> : vector<8x96xf32>
    %13 = tpu.matmul %11, %12, %cst_8 {dimension_numbers = #tpu.dot_dimension_numbers<[1], [0], [0], [1], [0, 0, 1, 1], [], []>} : vector<8x96xf32>, vector<96x96xf32>, vector<8x96xf32> -> vector<8x96xf32>
    %14 = vector.broadcast %8 : vector<8x1xf32> to vector<8x96xf32>
    %15 = arith.subf %6, %14 : vector<8x96xf32>
    %16 = math.log %13 : vector<8x96xf32>
    %17 = arith.subf %15, %16 : vector<8x96xf32>
    %18 = arith.mulf %17, %0 : vector<8x96xf32>
    %c0_9 = arith.constant 0 : index
    %c0_10 = arith.constant 0 : index
    %19 = vector.load %arg5[%c0_9, %c0_10] : memref<96x32xf32, #tpu.memory_space<vmem>>, vector<96x32xf32>
    %cst_11 = arith.constant dense<0.000000e+00> : vector<8x32xf32>
    %20 = tpu.matmul %18, %19, %cst_11 {dimension_numbers = #tpu.dot_dimension_numbers<[1], [0], [0], [1], [0, 0, 1, 1], [], []>} : vector<8x96xf32>, vector<96x32xf32>, vector<8x32xf32> -> vector<8x32xf32>
    %c0_12 = arith.constant 0 : index
    %c0_13 = arith.constant 0 : index
    %21 = vector.load %arg6[%c0_12, %c0_13] : memref<1x32xf32, #tpu.memory_space<vmem>>, vector<1x32xf32>
    %22 = vector.broadcast %21 : vector<1x32xf32> to vector<8x32xf32>
    %23 = arith.addf %20, %22 : vector<8x32xf32>
    %cst_14 = arith.constant dense<0xFF800000> : vector<8xf32>
    %24 = vector.multi_reduction <maximumf>, %23, %cst_14 [1] : vector<8x32xf32> to vector<8xf32>
    %25 = vector.shape_cast %24 : vector<8xf32> to vector<8x1xf32>
    %26 = vector.broadcast %25 : vector<8x1xf32> to vector<8x32xf32>
    %27 = arith.subf %23, %26 : vector<8x32xf32>
    %28 = math.exp %27 : vector<8x32xf32>
    %cst_15 = arith.constant dense<0.000000e+00> : vector<8xf32>
    %29 = vector.multi_reduction <add>, %28, %cst_15 [1] : vector<8x32xf32> to vector<8xf32>
    %30 = vector.shape_cast %29 : vector<8xf32> to vector<8x1xf32>
    %31 = math.log %30 : vector<8x1xf32>
    %32 = vector.broadcast %31 : vector<8x1xf32> to vector<8x32xf32>
    %33 = arith.subf %27, %32 : vector<8x32xf32>
    %34 = tpu.concatenate %17, %33 in 1 : vector<8x96xf32>, vector<8x32xf32> -> vector<8x128xf32>
    %c0_16 = arith.constant 0 : index
    %c0_17 = arith.constant 0 : index
    %35 = vector.load %arg7[%c0_16, %c0_17] : memref<8x128xf32, #tpu.memory_space<vmem>>, vector<8x128xf32>
    tpu.vector_store %arg7[%c0_16, %c0_17], %34 {strides = array<i32>} : memref<8x128xf32, #tpu.memory_space<vmem>>, vector<8x128xf32>,
    return
  }
  func.func @transform_0(%arg0: i32) -> (i32, i32) {
    %c0_i32 = arith.constant 0 : i32
    %c0_i32_0 = arith.constant 0 : i32
    return %arg0, %c0_i32 : i32, i32
  }
  func.func @transform_1(%arg0: i32) -> (i32, i32) {
    %c0_i32 = arith.constant 0 : i32
    %c0_i32_0 = arith.constant 0 : i32
    %c0_i32_1 = arith.constant 0 : i32
    return %c0_i32, %c0_i32_0 : i32, i32
  }
  func.func @transform_2(%arg0: i32) -> (i32, i32) {
    %c0_i32 = arith.constant 0 : i32
    %c0_i32_0 = arith.constant 0 : i32
    %c0_i32_1 = arith.constant 0 : i32
    return %c0_i32, %c0_i32_0 : i32, i32
  }
  func.func @transform_3(%arg0: i32) -> (i32, i32) {
    %c0_i32 = arith.constant 0 : i32
    %c0_i32_0 = arith.constant 0 : i32
    %c0_i32_1 = arith.constant 0 : i32
    return %c0_i32, %c0_i32_0 : i32, i32
  }
  func.func @transform_4(%arg0: i32) -> (i32, i32) {
    %c0_i32 = arith.constant 0 : i32
    %c0_i32_0 = arith.constant 0 : i32
    %c0_i32_1 = arith.constant 0 : i32
    return %c0_i32, %c0_i32_0 : i32, i32
  }
  func.func @transform_5(%arg0: i32) -> (i32, i32) {
    %c0_i32 = arith.constant 0 : i32
    %c0_i32_0 = arith.constant 0 : i32
    %c0_i32_1 = arith.constant 0 : i32
    return %c0_i32, %c0_i32_0 : i32, i32
  }
  func.func @transform_6(%arg0: i32) -> (i32, i32) {
    %c0_i32 = arith.constant 0 : i32
    %c0_i32_0 = arith.constant 0 : i32
    return %arg0, %c0_i32 : i32, i32
  }
}

module attributes {stable_mosaic.version = 11 : i64} {
  func.func @_consists_kernel_fused(%arg0: i32, %arg1: memref<8x96xf32, #tpu.memory_space<vmem>>, %arg2: memref<96x96xf32, #tpu.memory_space<vmem>>, %arg3: memref<1x96xf32, #tpu.memory_space<vmem>>, %arg4: memref<96x96xf32, #tpu.memory_space<vmem>>, %arg5: memref<96x32xf32, #tpu.memory_space<vmem>>, %arg6: memref<1x32xf32, #tpu.memory_space<vmem>>, %arg7: memref<8x128xf32, #tpu.memory_space<vmem>>) attributes {dimension_semantics = [#tpu.dimension_semantics<parallel>], iteration_bounds = array<i64: 2>, scalar_prefetch = 0 : i64, scratch_operands = 0 : i64, tpu.core_type = #tpu.core_type<tc>, window_params = [{transform_indices = @transform_0, window_bounds = array<i64: 8, 96>}, {pipeline_mode = #tpu.pipeline_mode<synchronous>, transform_indices = @transform_1, window_bounds = array<i64: 96, 96>}, {pipeline_mode = #tpu.pipeline_mode<synchronous>, transform_indices = @transform_2, window_bounds = array<i64: 1, 96>}, {pipeline_mode = #tpu.pipeline_mode<synchronous>, transform_indices = @transform_3, window_bounds = array<i64: 96, 96>}, {pipeline_mode = #tpu.pipeline_mode<synchronous>, transform_indices = @transform_4, window_bounds = array<i64: 96, 32>}, {pipeline_mode = #tpu.pipeline_mode<synchronous>, transform_indices = @transform_5, window_bounds = array<i64: 1, 32>}, {transform_indices = @transform_6, window_bounds = array<i64: 8, 128>}]} {
    %c0 = arith.constant 0 : index
    %c0_0 = arith.constant 0 : index
    %0 = vector.load %arg1[%c0, %c0_0] : memref<8x96xf32, #tpu.memory_space<vmem>>, vector<8x96xf32>
    %c0_1 = arith.constant 0 : index
    %c0_2 = arith.constant 0 : index
    %1 = vector.load %arg2[%c0_1, %c0_2] : memref<96x96xf32, #tpu.memory_space<vmem>>, vector<96x96xf32>
    %cst = arith.constant dense<0.000000e+00> : vector<8x96xf32>
    %2 = tpu.matmul %0, %1, %cst {dimension_numbers = #tpu.dot_dimension_numbers<[1], [0], [0], [1], [0, 0, 1, 1], [], []>} : vector<8x96xf32>, vector<96x96xf32>, vector<8x96xf32> -> vector<8x96xf32>
    %c0_3 = arith.constant 0 : index
    %c0_4 = arith.constant 0 : index
    %3 = vector.load %arg3[%c0_3, %c0_4] : memref<1x96xf32, #tpu.memory_space<vmem>>, vector<1x96xf32>
    %4 = vector.broadcast %3 : vector<1x96xf32> to vector<8x96xf32>
    %5 = arith.addf %2, %4 : vector<8x96xf32>
    %6 = math.tanh %5 : vector<8x96xf32>
    %cst_5 = arith.constant dense<0xFF800000> : vector<8xf32>
    %7 = vector.multi_reduction <maximumf>, %6, %cst_5 [1] : vector<8x96xf32> to vector<8xf32>
    %8 = vector.shape_cast %7 : vector<8xf32> to vector<8x1xf32>
    %9 = vector.broadcast %8 : vector<8x1xf32> to vector<8x96xf32>
    %10 = arith.subf %6, %9 : vector<8x96xf32>
    %11 = math.exp %10 : vector<8x96xf32>
    %c0_6 = arith.constant 0 : index
    %c0_7 = arith.constant 0 : index
    %12 = vector.load %arg4[%c0_6, %c0_7] : memref<96x96xf32, #tpu.memory_space<vmem>>, vector<96x96xf32>
    %cst_8 = arith.constant dense<0.000000e+00> : vector<8x96xf32>
    %13 = tpu.matmul %11, %12, %cst_8 {dimension_numbers = #tpu.dot_dimension_numbers<[1], [0], [0], [1], [0, 0, 1, 1], [], []>} : vector<8x96xf32>, vector<96x96xf32>, vector<8x96xf32> -> vector<8x96xf32>
    %14 = vector.broadcast %8 : vector<8x1xf32> to vector<8x96xf32>
    %15 = arith.subf %6, %14 : vector<8x96xf32>
    %16 = math.log %13 : vector<8x96xf32>
    %17 = arith.subf %15, %16 : vector<8x96xf32>
    %18 = arith.mulf %17, %0 : vector<8x96xf32>
    %c0_9 = arith.constant 0 : index
    %c0_10 = arith.constant 0 : index
    %19 = vector.load %arg5[%c0_9, %c0_10] : memref<96x32xf32, #tpu.memory_space<vmem>>, vector<96x32xf32>
    %cst_11 = arith.constant dense<0.000000e+00> : vector<8x32xf32>
    %20 = tpu.matmul %18, %19, %cst_11 {dimension_numbers = #tpu.dot_dimension_numbers<[1], [0], [0], [1], [0, 0, 1, 1], [], []>} : vector<8x96xf32>, vector<96x32xf32>, vector<8x32xf32> -> vector<8x32xf32>
    %c0_12 = arith.constant 0 : index
    %c0_13 = arith.constant 0 : index
    %21 = vector.load %arg6[%c0_12, %c0_13] : memref<1x32xf32, #tpu.memory_space<vmem>>, vector<1x32xf32>
    %22 = vector.broadcast %21 : vector<1x32xf32> to vector<8x32xf32>
    %23 = arith.addf %20, %22 : vector<8x32xf32>
    %cst_14 = arith.constant dense<0xFF800000> : vector<8xf32>
    %24 = vector.multi_reduction <maximumf>, %23, %cst_14 [1] : vector<8x32xf32> to vector<8xf32>
    %25 = vector.shape_cast %24 : vector<8xf32> to vector<8x1xf32>
    %26 = vector.broadcast %25 : vector<8x1xf32> to vector<8x32xf32>
    %27 = arith.subf %23, %26 : vector<8x32xf32>
    %28 = math.exp %27 : vector<8x32xf32>
    %cst_15 = arith.constant dense<0.000000e+00> : vector<8xf32>
    %29 = vector.multi_reduction <add>, %28, %cst_15 [1] : vector<8x32xf32> to vector<8xf32>
    %30 = vector.shape_cast %29 : vector<8xf32> to vector<8x1xf32>
    %31 = math.log %30 : vector<8x1xf32>
    %32 = vector.broadcast %31 : vector<8x1xf32> to vector<8x32xf32>
    %33 = arith.subf %27, %32 : vector<8x32xf32>
    %34 = tpu.concatenate %17, %33 in 1 : vector<8x96xf32>, vector<8x32xf32> -> vector<8x128xf32>
    %c0_16 = arith.constant 0 : index
    %c0_17 = arith.constant 0 : index
    %35 = vector.load %arg7[%c0_16, %c0_17] : memref<8x128xf32, #tpu.memory_space<vmem>>, vector<8x128xf32>
    tpu.vector_store %arg7[%c0_16, %c0_17], %34 {strides = array<i32>} : memref<8x128xf32, #tpu.memory_space<vmem>>, vector<8x128xf32>,
    return
  }
  func.func @transform_0(%arg0: i32) -> (i32, i32) {
    %c0_i32 = arith.constant 0 : i32
    %c0_i32_0 = arith.constant 0 : i32
    return %arg0, %c0_i32 : i32, i32
  }
  func.func @transform_1(%arg0: i32) -> (i32, i32) {
    %c0_i32 = arith.constant 0 : i32
    %c0_i32_0 = arith.constant 0 : i32
    %c0_i32_1 = arith.constant 0 : i32
    return %c0_i32, %c0_i32_0 : i32, i32
  }
  func.func @transform_2(%arg0: i32) -> (i32, i32) {
    %c0_i32 = arith.constant 0 : i32
    %c0_i32_0 = arith.constant 0 : i32
    %c0_i32_1 = arith.constant 0 : i32
    return %c0_i32, %c0_i32_0 : i32, i32
  }
  func.func @transform_3(%arg0: i32) -> (i32, i32) {
    %c0_i32 = arith.constant 0 : i32
    %c0_i32_0 = arith.constant 0 : i32
    %c0_i32_1 = arith.constant 0 : i32
    return %c0_i32, %c0_i32_0 : i32, i32
  }
  func.func @transform_4(%arg0: i32) -> (i32, i32) {
    %c0_i32 = arith.constant 0 : i32
    %c0_i32_0 = arith.constant 0 : i32
    %c0_i32_1 = arith.constant 0 : i32
    return %c0_i32, %c0_i32_0 : i32, i32
  }
  func.func @transform_5(%arg0: i32) -> (i32, i32) {
    %c0_i32 = arith.constant 0 : i32
    %c0_i32_0 = arith.constant 0 : i32
    %c0_i32_1 = arith.constant 0 : i32
    return %c0_i32, %c0_i32_0 : i32, i32
  }
  func.func @transform_6(%arg0: i32) -> (i32, i32) {
    %c0_i32 = arith.constant 0 : i32
    %c0_i32_0 = arith.constant 0 : i32
    return %arg0, %c0_i32 : i32, i32
  }
}

</mosaic_0001>

<llo_original>
// kernel: tpu_custom_call.1
$region0: #{tpu_custom_call.1}
  #allocation0 [shape = 'u32[]', space=smem, size = 0x4, offset = 0x4, fixed_abs, tag = 'smem constant byte address 0x4 - core index']
  #allocation1 [shape = 'u32[72,128]{1,0:T(1,128)}', space=vmem, size = 0x9000, scoped, tag = 'internal scratch']
  %s0 = inlined_call_operand.vmem [shape: f32[16,96], index: 0, kind: input, shape index: {}]
  %s1 = inlined_call_operand.vmem [shape: f32[96,96], index: 1, kind: input, shape index: {}]
  %s2 = inlined_call_operand.vmem [shape: f32[1,96], index: 2, kind: input, shape index: {}]
  %s3 = inlined_call_operand.hbm [shape: f32[96,96], index: 3, kind: input, shape index: {}]
  %s4 = inlined_call_operand.vmem [shape: f32[96,32], index: 4, kind: input, shape index: {}]
  %s5 = inlined_call_operand.vmem [shape: f32[1,32], index: 5, kind: input, shape index: {}]
  %s6 = inlined_call_operand.hbm [shape: f32[16,128], index: 6, kind: output, shape index: {}]
  %s7 = sld [smem:[#allocation0]]
  $region61: #{tpu_custom_call.1} parent=0
    _
  %s9 = ssub.s32 1, %s7
  %s10 = scalar_select 0, %s9, %s7
  $region1: #{tpu_custom_call.1} parent=0
    #allocation2 [shape = 'u8[49152]{0}', space=vmem, size = 0xc000, scoped, tag = 'input window, operand 3, single buffered']
    #allocation3 [shape = 's32[2]{0}', space=sflag, size = 0x8, scoped, tag = 'scoped memory for tpu_custom_call.1']
    #allocation4 [shape = 's32[2]{0}', space=sflag, size = 0x8, scoped, tag = 'scoped memory for tpu_custom_call.1']
    #allocation5 [shape = 'u8[8192]{0}', space=vmem, size = 0x2000, scoped, tag = 'output window, operand 0']
    %11 = vsyncpa [#allocation3], 0
    %12 = vsyncpa [#allocation4], 0
    %s13 = scalar_lea.sflag [#allocation4], 1
    %14 = vsyncpa %s13, 0
    loop: start=0, step=1, limit=4
    $region2: #{tpu_custom_call.1} parent=1 // loop_pre_header
      _
    $region3: #{tpu_custom_call.1} parent=1 // loop_header
      %s16 = sphi 0, %s20
      %p17 = scmp.ge.s32.totalorder %s16, 4
      %s26 = sphi 0, %s28
      %s29 = sphi 0, %s26
      %s30 = sphi 0, %s29
      %s46 = sphi 0, %s30
      %s50 = sphi 0, %s50
      %s52 = sphi 0, %s50
      %s53 = sphi 0, %s52
      %s67 = sphi 0, %s53
      %s71 = sphi 0, %s71
      %s73 = sphi 0, %s71
      %s74 = sphi 0, %s73
      %s88 = sphi 0, %s74
      %s92 = sphi 0, %s92
      %s94 = sphi 0, %s92
      %s95 = sphi 0, %s94
      %s109 = sphi 0, %s95
      %s113 = sphi 0, %s113
      %s115 = sphi 0, %s113
      %s116 = sphi 0, %s115
      %s130 = sphi 0, %s116
      %s134 = sphi 0, %s134
      %s136 = sphi 0, %s134
      %s137 = sphi 0, %s136
      %s151 = sphi 0, %s137
      %s157 = sphi 0, %s159
      %s160 = sphi 0, %s157
      %s161 = sphi 0, %s160
      %s177 = sphi 0, %s161
    $region4: #{tpu_custom_call.1} parent=1 // loop_header_branch
      %19 = sbr.rel (%p17) target = $region8
    $region5: #{tpu_custom_call.1} parent=1 // loop_body
      %s21 = ssub.s32 %s16, 1
      %s22 = ssub.s32 %s16, 2
      %s23 = sadd.s32 %s16, 1
      %s24 = ssub.s32 %s16, %s23
      %p25 = scmp.eq.s32.totalorder %s24, 0
      %s27 = sadd.s32 %s26, 1
      %s28 = scalar_select %p25, %s26, %s27
      %p31 = pneg %p25
      %p32 = scmp.eq.s32.totalorder %s16, 1
      %p33 = por %p31, %p32
      %p34 = scmp.ne.s32.totalorder %s26, %s29
      %p35 = scmp.eq.s32.totalorder %s16, 0
      %p36 = por %p34, %p35
      %p37 = scmp.ne.s32.totalorder %s26, %s29
      %p38 = scmp.eq.s32.totalorder %s21, 1
      %p39 = por %p37, %p38
      %p40 = scmp.ne.s32.totalorder %s29, %s30
      %p41 = scmp.eq.s32.totalorder %s21, 0
      %p42 = por %p40, %p41
      %p43 = scmp.ne.s32.totalorder %s29, %s30
      %p44 = scmp.eq.s32.totalorder %s22, 1
      %p45 = por %p43, %p44
      %p47 = scmp.ne.s32.totalorder %s30, %s46
      %p48 = scmp.eq.s32.totalorder %s22, 0
      %p49 = por %p47, %p48
      %s51 = sadd.s32 %s50, 1
      %p54 = scmp.eq.s32.totalorder %s16, 1
      %p55 = scmp.ne.s32.totalorder %s50, %s52
      %p56 = scmp.eq.s32.totalorder %s16, 0
      %p57 = por %p55, %p56
      %p58 = scmp.ne.s32.totalorder %s50, %s52
      %p59 = scmp.eq.s32.totalorder %s21, 1
      %p60 = por %p58, %p59
      %p61 = scmp.ne.s32.totalorder %s52, %s53
      %p62 = scmp.eq.s32.totalorder %s21, 0
      %p63 = por %p61, %p62
      %p64 = scmp.ne.s32.totalorder %s52, %s53
      %p65 = scmp.eq.s32.totalorder %s22, 1
      %p66 = por %p64, %p65
      %p68 = scmp.ne.s32.totalorder %s53, %s67
      %p69 = scmp.eq.s32.totalorder %s22, 0
      %p70 = por %p68, %p69
      %s72 = sadd.s32 %s71, 1
      %p75 = scmp.eq.s32.totalorder %s16, 1
      %p76 = scmp.ne.s32.totalorder %s71, %s73
      %p77 = scmp.eq.s32.totalorder %s16, 0
      %p78 = por %p76, %p77
      %p79 = scmp.ne.s32.totalorder %s71, %s73
      %p80 = scmp.eq.s32.totalorder %s21, 1
      %p81 = por %p79, %p80
      %p82 = scmp.ne.s32.totalorder %s73, %s74
      %p83 = scmp.eq.s32.totalorder %s21, 0
      %p84 = por %p82, %p83
      %p85 = scmp.ne.s32.totalorder %s73, %s74
      %p86 = scmp.eq.s32.totalorder %s22, 1
      %p87 = por %p85, %p86
      %p89 = scmp.ne.s32.totalorder %s74, %s88
      %p90 = scmp.eq.s32.totalorder %s22, 0
      %p91 = por %p89, %p90
      %s93 = sadd.s32 %s92, 1
      %p96 = scmp.eq.s32.totalorder %s16, 1
      %p97 = scmp.ne.s32.totalorder %s92, %s94
      %p98 = scmp.eq.s32.totalorder %s16, 0
      %p99 = por %p97, %p98
      %p100 = scmp.ne.s32.totalorder %s92, %s94
      %p101 = scmp.eq.s32.totalorder %s21, 1
      %p102 = por %p100, %p101
      %p103 = scmp.ne.s32.totalorder %s94, %s95
      %p104 = scmp.eq.s32.totalorder %s21, 0
      %p105 = por %p103, %p104
      %p106 = scmp.ne.s32.totalorder %s94, %s95
      %p107 = scmp.eq.s32.totalorder %s22, 1
      %p108 = por %p106, %p107
      %p110 = scmp.ne.s32.totalorder %s95, %s109
      %p111 = scmp.eq.s32.totalorder %s22, 0
      %p112 = por %p110, %p111
      %s114 = sadd.s32 %s113, 1
      %p117 = scmp.eq.s32.totalorder %s16, 1
      %p118 = scmp.ne.s32.totalorder %s113, %s115
      %p119 = scmp.eq.s32.totalorder %s16, 0
      %p120 = por %p118, %p119
      %p121 = scmp.ne.s32.totalorder %s113, %s115
      %p122 = scmp.eq.s32.totalorder %s21, 1
      %p123 = por %p121, %p122
      %p124 = scmp.ne.s32.totalorder %s115, %s116
      %p125 = scmp.eq.s32.totalorder %s21, 0
      %p126 = por %p124, %p125
      %p127 = scmp.ne.s32.totalorder %s115, %s116
      %p128 = scmp.eq.s32.totalorder %s22, 1
      %p129 = por %p127, %p128
      %p131 = scmp.ne.s32.totalorder %s116, %s130
      %p132 = scmp.eq.s32.totalorder %s22, 0
      %p133 = por %p131, %p132
      %s135 = sadd.s32 %s134, 1
      %p138 = scmp.eq.s32.totalorder %s16, 1
      %p139 = scmp.ne.s32.totalorder %s134, %s136
      %p140 = scmp.eq.s32.totalorder %s16, 0
      %p141 = por %p139, %p140
      %p142 = scmp.ne.s32.totalorder %s134, %s136
      %p143 = scmp.eq.s32.totalorder %s21, 1
      %p144 = por %p142, %p143
      %p145 = scmp.ne.s32.totalorder %s136, %s137
      %p146 = scmp.eq.s32.totalorder %s21, 0
      %p147 = por %p145, %p146
      %p148 = scmp.ne.s32.totalorder %s136, %s137
      %p149 = scmp.eq.s32.totalorder %s22, 1
      %p150 = por %p148, %p149
      %p152 = scmp.ne.s32.totalorder %s137, %s151
      %p153 = scmp.eq.s32.totalorder %s22, 0
      %p154 = por %p152, %p153
      %s155 = ssub.s32 %s16, %s23
      %p156 = scmp.eq.s32.totalorder %s155, 0
      %s158 = sadd.s32 %s157, 1
      %s159 = scalar_select %p156, %s157, %s158
      %p162 = pneg %p156
      %p163 = scmp.eq.s32.totalorder %s16, 1
      %p164 = por %p162, %p163
      %p165 = scmp.ne.s32.totalorder %s157, %s160
      %p166 = scmp.eq.s32.totalorder %s16, 0
      %p167 = por %p165, %p166
      %p168 = scmp.ne.s32.totalorder %s157, %s160
      %p169 = scmp.eq.s32.totalorder %s21, 1
      %p170 = por %p168, %p169
      %p171 = scmp.ne.s32.totalorder %s160, %s161
      %p172 = scmp.eq.s32.totalorder %s21, 0
      %p173 = por %p171, %p172
      %p174 = scmp.ne.s32.totalorder %s160, %s161
      %p175 = scmp.eq.s32.totalorder %s22, 1
      %p176 = por %p174, %p175
      %p178 = scmp.ne.s32.totalorder %s161, %s177
      %p179 = scmp.eq.s32.totalorder %s22, 0
      %p180 = por %p178, %p179
      %p181 = scmp.le.s32.totalorder 1, %s16
      %p182 = scmp.lt.s32.totalorder %s16, 3
      %p183 = pnand %p181, %p182
      %p184 = pneg %p183
      // Predicated region
      $region9: #{tpu_custom_call.1} parent=5 // pred_check
        _
      $region10: #{tpu_custom_call.1} parent=5 // pred_check_branch
        %186 = sbr.rel (%p183) target = $region12
      $region11: #{tpu_custom_call.1} parent=5 // pred_region
        %s187 = ssub.s32 %s16, 1
        // Predicated region
        $region13: #{tpu_custom_call.1} parent=11 // pred_check
          %p188 = pneg %p63
        $region14: #{tpu_custom_call.1} parent=11 // pred_check_branch
          %190 = sbr.rel (%p188) target = $region16
        $region15: #{tpu_custom_call.1} parent=11 // pred_region
          _
        $region16: #{tpu_custom_call.1} parent=11 // pred_fallthru
          _
        // Predicated region
        $region17: #{tpu_custom_call.1} parent=11 // pred_check
          %p191 = pneg %p84
        $region18: #{tpu_custom_call.1} parent=11 // pred_check_branch
          %193 = sbr.rel (%p191) target = $region20
        $region19: #{tpu_custom_call.1} parent=11 // pred_region
          _
        $region20: #{tpu_custom_call.1} parent=11 // pred_fallthru
          _
        // Predicated region
        $region21: #{tpu_custom_call.1} parent=11 // pred_check
          %p194 = pneg %p105
        $region22: #{tpu_custom_call.1} parent=11 // pred_check_branch
          %196 = sbr.rel (%p194) target = $region24
        $region23: #{tpu_custom_call.1} parent=11 // pred_region
          %198 = vsyncadd [#allocation3], 0
          %s199 = sshll.u32 %s3, 4
          %s200 = int_to_ptr.hbm [resolvable:$true] %s199
          %s201 = sshll.u32 [#allocation2], 4
          %s202 = int_to_ptr.vmem [resolvable:$true] %s201
          %207 = dma.hbm_to_vmem [thread:$0]  %s200, 1536, %s202, [#allocation3], 128, 128, 8
        $region24: #{tpu_custom_call.1} parent=11 // pred_fallthru
          _
        // Predicated region
        $region25: #{tpu_custom_call.1} parent=11 // pred_check
          %p208 = pneg %p126
        $region26: #{tpu_custom_call.1} parent=11 // pred_check_branch
          %210 = sbr.rel (%p208) target = $region28
        $region27: #{tpu_custom_call.1} parent=11 // pred_region
          _
        $region28: #{tpu_custom_call.1} parent=11 // pred_fallthru
          _
        // Predicated region
        $region29: #{tpu_custom_call.1} parent=11 // pred_check
          %p211 = pneg %p147
        $region30: #{tpu_custom_call.1} parent=11 // pred_check_branch
          %213 = sbr.rel (%p211) target = $region32
        $region31: #{tpu_custom_call.1} parent=11 // pred_region
          _
        $region32: #{tpu_custom_call.1} parent=11 // pred_fallthru
          _
      $region12: #{tpu_custom_call.1} parent=5 // pred_fallthru
        _
      %p214 = scmp.lt.s32.totalorder %s16, 2
      // Predicated region
      $region33: #{tpu_custom_call.1} parent=5 // pred_check
        %p215 = pneg %p214
      $region34: #{tpu_custom_call.1} parent=5 // pred_check_branch
        %217 = sbr.rel (%p215) target = $region36
      $region35: #{tpu_custom_call.1} parent=5 // pred_region
        // Predicated region
        $region37: #{tpu_custom_call.1} parent=35 // pred_check
          %p218 = pneg %p36
        $region38: #{tpu_custom_call.1} parent=35 // pred_check_branch
          %220 = sbr.rel (%p218) target = $region40
        $region39: #{tpu_custom_call.1} parent=35 // pred_region
          %p221 = scmp.lt.s32.totalorder %s16, 1
          %s222 = scalar_select %p221, %s16, 1
          %s223 = smul.addr %s222, 8
          %s224 = scalar_lea.vmem %s0, %s223
        $region40: #{tpu_custom_call.1} parent=35 // pred_fallthru
          _
      $region36: #{tpu_custom_call.1} parent=5 // pred_fallthru
        _
      %p225 = scmp.le.s32.totalorder 1, %s16
      %p226 = scmp.lt.s32.totalorder %s16, 3
      %p227 = pnand %p225, %p226
      %p228 = pneg %p227
      // Predicated region
      $region41: #{tpu_custom_call.1} parent=5 // pred_check
        _
      $region42: #{tpu_custom_call.1} parent=5 // pred_check_branch
        %230 = sbr.rel (%p227) target = $region44
      $region43: #{tpu_custom_call.1} parent=5 // pred_region
        %s231 = ssub.s32 %s16, 1
        // Predicated region
        $region45: #{tpu_custom_call.1} parent=43 // pred_check
          %p232 = pneg %p105
        $region46: #{tpu_custom_call.1} parent=43 // pred_check_branch
          %234 = sbr.rel (%p232) target = $region48
        $region47: #{tpu_custom_call.1} parent=43 // pred_region
          %236 = dma.done [#allocation3], 1536
        $region48: #{tpu_custom_call.1} parent=43 // pred_fallthru
          _
        %p237 = scmp.lt.s32.totalorder %s21, 1
        %s238 = scalar_select %p237, %s21, 1
        %s239 = smul.addr %s238, 8
        %s240 = scalar_lea.vmem %s0, %s239
        %p241 = pneg %p42
        %p242 = pneg %p39
        %p243 = pneg %p63
        %p244 = pneg %p60
        %p245 = pneg %p84
        %p246 = pneg %p81
        %p247 = pneg %p105
        %p248 = pneg %p102
        %p249 = pneg %p126
        %p250 = pneg %p123
        %p251 = pneg %p147
        %p252 = pneg %p144
        %p253 = pneg %p173
        %p254 = pneg %p170
        %s255 = sand.u32 %s160, 1
        %s256 = scalar_lea.sflag [#allocation4], %s255
        %s257 = sand.u32 %s160, 1
        %s258 = smul.addr %s257, 8
        %s259 = scalar_lea.vmem [#allocation5], %s258
        %p260 = scmp.lt.s32.totalorder %s21, 1
        %s261 = scalar_select %p260, %s21, 1
        %s262 = smul.addr %s261, 8
        %s263 = scalar_lea.vmem %s0, %s262
        %v264 = vld [vmem:[%s263] sm:$0xff]
        %v265 = vld [vmem:[%s1] sm:$0xff]
        %v266 = vld [vmem:[%s1 + $0x8] sm:$0xff]
        %v267 = vld [vmem:[%s1 + $0x10] sm:$0xff]
        %v268 = vld [vmem:[%s1 + $0x18] sm:$0xff]
        %v269 = vld [vmem:[%s1 + $0x20] sm:$0xff]
        %v270 = vld [vmem:[%s1 + $0x28] sm:$0xff]
        %v271 = vld [vmem:[%s1 + $0x30] sm:$0xff]
        %v272 = vld [vmem:[%s1 + $0x38] sm:$0xff]
        %v273 = vld [vmem:[%s1 + $0x40] sm:$0xff]
        %v274 = vld [vmem:[%s1 + $0x48] sm:$0xff]
        %v275 = vld [vmem:[%s1 + $0x50] sm:$0xff]
        %v276 = vld [vmem:[%s1 + $0x58] sm:$0xff]
        %v277 = vld [vmem:[%s2] sm:$0x1]
        %v279 = vperm.slane %v277, 0
        %vm281 = vcmask 785408
        %v283 = vsel %vm281, %v264, 0
        %285 = vmatpush.msra.mxu0 0.0
        %286 = vmatpush.msra.mxu0 0.0
        %287 = vmatpush.msra.mxu0 0.0
        %288 = vmatpush.msra.mxu0 0.0
        %289 = vmatpush.msra.mxu0 %v276
        %290 = vmatpush.msra.mxu0 %v275
        %291 = vmatpush.msra.mxu0 %v274
        %292 = vmatpush.msra.mxu0 %v273
        %293 = vmatpush.msra.mxu0 %v272
        %294 = vmatpush.msra.mxu0 %v271
        %295 = vmatpush.msra.mxu0 %v270
        %296 = vmatpush.msra.mxu0 %v269
        %297 = vmatpush.msra.mxu0 %v268
        %298 = vmatpush.msra.mxu0 %v267
        %299 = vmatpush.msra.mxu0 %v266
        %300 = vmatpush.msra.mxu0 %v265
        %301 = vmatmul.f32.gmra.mxu0 %v283
        %v302 = vpop.f32.mrf.mxu0
        %v303 = vadd.f32 %v279, %v302
        %304 = vdwg.mxu0
        %v305 = vtanh.pop %v303
        %v306 = vsel %vm281, %v305, -inf
        %307 = vmax.xlane.f32.xlu0 %v306
        %v308 = vpop.xlane.xlu0 %307
        %v309 = vsub.f32 %v305, %v308
        %v310 = vmul.f32 %v309, 1.442695
        %v311 = vpow.pop %v310
        %v312 = vld [vmem:[#allocation2] sm:$0xff]
        %v313 = vld [vmem:[#allocation2 + $0x8] sm:$0xff]
        %v314 = vld [vmem:[#allocation2 + $0x10] sm:$0xff]
        %v315 = vld [vmem:[#allocation2 + $0x18] sm:$0xff]
        %v316 = vld [vmem:[#allocation2 + $0x20] sm:$0xff]
        %v317 = vld [vmem:[#allocation2 + $0x28] sm:$0xff]
        %v318 = vld [vmem:[#allocation2 + $0x30] sm:$0xff]
        %v319 = vld [vmem:[#allocation2 + $0x38] sm:$0xff]
        %v320 = vld [vmem:[#allocation2 + $0x40] sm:$0xff]
        %v321 = vld [vmem:[#allocation2 + $0x48] sm:$0xff]
        %v322 = vld [vmem:[#allocation2 + $0x50] sm:$0xff]
        %v323 = vld [vmem:[#allocation2 + $0x58] sm:$0xff]
        %v325 = vsel %vm281, %v311, 0
        %327 = vmatpush.msra.mxu0 0.0
        %328 = vmatpush.msra.mxu0 0.0
        %329 = vmatpush.msra.mxu0 0.0
        %330 = vmatpush.msra.mxu0 0.0
        %331 = vmatpush.msra.mxu0 %v323
        %332 = vmatpush.msra.mxu0 %v322
        %333 = vmatpush.msra.mxu0 %v321
        %334 = vmatpush.msra.mxu0 %v320
        %335 = vmatpush.msra.mxu0 %v319
        %336 = vmatpush.msra.mxu0 %v318
        %337 = vmatpush.msra.mxu0 %v317
        %338 = vmatpush.msra.mxu0 %v316
        %339 = vmatpush.msra.mxu0 %v315
        %340 = vmatpush.msra.mxu0 %v314
        %341 = vmatpush.msra.mxu0 %v313
        %342 = vmatpush.msra.mxu0 %v312
        %343 = vmatmul.f32.gmra.mxu0 %v325
        %v344 = vpop.f32.mrf.mxu0
        %v345 = vadd.f32 0.0, %v344
        %346 = vdwg.mxu0
        %v347 = vlog2.pop %v345
        %v348 = vmul.f32 %v347, 0.6931472
        %v349 = vsub.f32 %v309, %v348
        %v350 = vmul.f32 %v349, %v264
        %v351 = vld [vmem:[%s4] sm:$0xff]
        %v352 = vld [vmem:[%s4 + $0x8] sm:$0xff]
        %v353 = vld [vmem:[%s4 + $0x10] sm:$0xff]
        %v354 = vld [vmem:[%s4 + $0x18] sm:$0xff]
        %v355 = vld [vmem:[%s4 + $0x20] sm:$0xff]
        %v356 = vld [vmem:[%s4 + $0x28] sm:$0xff]
        %v357 = vld [vmem:[%s4 + $0x30] sm:$0xff]
        %v358 = vld [vmem:[%s4 + $0x38] sm:$0xff]
        %v359 = vld [vmem:[%s4 + $0x40] sm:$0xff]
        %v360 = vld [vmem:[%s4 + $0x48] sm:$0xff]
        %v361 = vld [vmem:[%s4 + $0x50] sm:$0xff]
        %v362 = vld [vmem:[%s4 + $0x58] sm:$0xff]
        %v363 = vld [vmem:[%s5] sm:$0x1]
        %v365 = vperm.slane %v363, 0
        %v368 = vsel %vm281, %v350, 0
        %370 = vmatpush.msra.mxu0 0.0
        %371 = vmatpush.msra.mxu0 0.0
        %372 = vmatpush.msra.mxu0 0.0
        %373 = vmatpush.msra.mxu0 0.0
        %374 = vmatpush.msra.mxu0 %v362
        %375 = vmatpush.msra.mxu0 %v361
        %376 = vmatpush.msra.mxu0 %v360
        %377 = vmatpush.msra.mxu0 %v359
        %378 = vmatpush.msra.mxu0 %v358
        %379 = vmatpush.msra.mxu0 %v357
        %380 = vmatpush.msra.mxu0 %v356
        %381 = vmatpush.msra.mxu0 %v355
        %382 = vmatpush.msra.mxu0 %v354
        %383 = vmatpush.msra.mxu0 %v353
        %384 = vmatpush.msra.mxu0 %v352
        %385 = vmatpush.msra.mxu0 %v351
        %386 = vmatmul.f32.gmra.mxu0 %v368
        %v387 = vpop.f32.mrf.mxu0
        %v388 = vadd.f32 %v365, %v387
        %389 = vdwg.mxu0
        %vm390 = vcmask 261120
        %v391 = vsel %vm390, %v388, -inf
        %392 = vmax.xlane.f32.xlu0 %v391
        %v393 = vpop.xlane.xlu0 %392
        %v394 = vsub.f32 %v388, %v393
        %v395 = vmul.f32 %v394, 1.442695
        %v396 = vpow.pop %v395
        %v397 = vsel %vm390, %v396, 0.0
        %398 = vadd.xlane.f32.xlu0 %v397
        %v399 = vpop.xlane.xlu0 %398
        %v400 = vlog2.pop %v399
        %v401 = vmul.f32 %v400, 0.6931472
        %v402 = vsub.f32 %v394, %v401
        %404 = vrot.lane.b32.xlu0 %v402, 96
        %v405 = vpop.permute.xlu0 %404
        %v407 = vsel %vm281, %v349, %v405
        %408 = vst [vmem:[%s259] sm:$0xff] %v407
        %s409 = sand.u32 %s160, 1
        %s410 = scalar_lea.sflag [#allocation4], %s409
        %s411 = sand.u32 %s160, 1
        %s412 = smul.addr %s411, 8
        %s413 = scalar_lea.vmem [#allocation5], %s412
        // Predicated region
        $region49: #{tpu_custom_call.1} parent=43 // pred_check
          %p414 = pneg %p170
        $region50: #{tpu_custom_call.1} parent=43 // pred_check_branch
          %416 = sbr.rel (%p414) target = $region52
        $region51: #{tpu_custom_call.1} parent=43 // pred_region
          %418 = vsyncadd %s410, 0
          %s419 = smul.addr %s21, 8
          %s420 = scalar_lea.hbm %s6, %s419
          %s422 = sshll.u32 %s413, 4
          %s423 = int_to_ptr.vmem [resolvable:$true] %s422
          %s424 = sshll.u32 %s420, 4
          %s425 = int_to_ptr.hbm [resolvable:$true] %s424
          %427 = dma.vmem_to_hbm [thread:$0]  %s423, 128, %s425, %s410
        $region52: #{tpu_custom_call.1} parent=43 // pred_fallthru
          _
      $region44: #{tpu_custom_call.1} parent=5 // pred_fallthru
        _
      %p428 = scmp.le.s32.totalorder 2, %s16
      // Predicated region
      $region53: #{tpu_custom_call.1} parent=5 // pred_check
        %p429 = pneg %p428
      $region54: #{tpu_custom_call.1} parent=5 // pred_check_branch
        %431 = sbr.rel (%p429) target = $region56
      $region55: #{tpu_custom_call.1} parent=5 // pred_region
        %s432 = ssub.s32 %s16, 2
        // Predicated region
        $region57: #{tpu_custom_call.1} parent=55 // pred_check
          %p433 = pneg %p176
        $region58: #{tpu_custom_call.1} parent=55 // pred_check_branch
          %435 = sbr.rel (%p433) target = $region60
        $region59: #{tpu_custom_call.1} parent=55 // pred_region
          %s436 = sand.u32 %s161, 1
          %s437 = scalar_lea.sflag [#allocation4], %s436
          %s438 = sand.u32 %s161, 1
          %s439 = smul.addr %s438, 8
          %s440 = scalar_lea.vmem [#allocation5], %s439
          %442 = dma.done %s437, 128
        $region60: #{tpu_custom_call.1} parent=55 // pred_fallthru
          _
      $region56: #{tpu_custom_call.1} parent=5 // pred_fallthru
        _
    $region6: #{tpu_custom_call.1} parent=1 // loop_footer
      %s20 = sadd.s32 1, %s16
    $region7: #{tpu_custom_call.1} parent=1 // loop_footer_branch
      %15 = sbr.rel target = $region3
    $region8: #{tpu_custom_call.1} parent=1 // loop_exit
      _
    %443 = vsyncpa [#allocation3], 1
    %s444 = scalar_lea.sflag [#allocation3], 1
    %445 = vsyncpa %s444, 1
    %446 = vsyncpa [#allocation4], 1
    %s447 = scalar_lea.sflag [#allocation4], 1
    %448 = vsyncpa %s447, 1

// kernel: tpu_custom_call.1
$region0: #{tpu_custom_call.1}
  #allocation0 [shape = 'u32[]', space=smem, size = 0x4, offset = 0x4, fixed_abs, tag = 'smem constant byte address 0x4 - core index']
  #allocation1 [shape = 'u32[72,128]{1,0:T(1,128)}', space=vmem, size = 0x9000, scoped, tag = 'internal scratch']
  %s0 = inlined_call_operand.vmem [shape: f32[16,96], index: 0, kind: input, shape index: {}]
  %s1 = inlined_call_operand.vmem [shape: f32[96,96], index: 1, kind: input, shape index: {}]
  %s2 = inlined_call_operand.vmem [shape: f32[1,96], index: 2, kind: input, shape index: {}]
  %s3 = inlined_call_operand.hbm [shape: f32[96,96], index: 3, kind: input, shape index: {}]
  %s4 = inlined_call_operand.vmem [shape: f32[96,32], index: 4, kind: input, shape index: {}]
  %s5 = inlined_call_operand.vmem [shape: f32[1,32], index: 5, kind: input, shape index: {}]
  %s6 = inlined_call_operand.hbm [shape: f32[16,128], index: 6, kind: output, shape index: {}]
  %s7 = sld [smem:[#allocation0]]
  $region61: #{tpu_custom_call.1} parent=0
    _
  %s9 = ssub.s32 1, %s7
  %s10 = scalar_select 0, %s9, %s7
  $region1: #{tpu_custom_call.1} parent=0
    #allocation2 [shape = 'u8[49152]{0}', space=vmem, size = 0xc000, scoped, tag = 'input window, operand 3, single buffered']
    #allocation3 [shape = 's32[2]{0}', space=sflag, size = 0x8, scoped, tag = 'scoped memory for tpu_custom_call.1']
    #allocation4 [shape = 's32[2]{0}', space=sflag, size = 0x8, scoped, tag = 'scoped memory for tpu_custom_call.1']
    #allocation5 [shape = 'u8[8192]{0}', space=vmem, size = 0x2000, scoped, tag = 'output window, operand 0']
    %11 = vsyncpa [#allocation3], 0
    %12 = vsyncpa [#allocation4], 0
    %s13 = scalar_lea.sflag [#allocation4], 1
    %14 = vsyncpa %s13, 0
    loop: start=0, step=1, limit=4
    $region2: #{tpu_custom_call.1} parent=1 // loop_pre_header
      _
    $region3: #{tpu_custom_call.1} parent=1 // loop_header
      %s16 = sphi 0, %s20
      %p17 = scmp.ge.s32.totalorder %s16, 4
      %s26 = sphi 0, %s28
      %s29 = sphi 0, %s26
      %s30 = sphi 0, %s29
      %s46 = sphi 0, %s30
      %s50 = sphi 0, %s50
      %s52 = sphi 0, %s50
      %s53 = sphi 0, %s52
      %s67 = sphi 0, %s53
      %s71 = sphi 0, %s71
      %s73 = sphi 0, %s71
      %s74 = sphi 0, %s73
      %s88 = sphi 0, %s74
      %s92 = sphi 0, %s92
      %s94 = sphi 0, %s92
      %s95 = sphi 0, %s94
      %s109 = sphi 0, %s95
      %s113 = sphi 0, %s113
      %s115 = sphi 0, %s113
      %s116 = sphi 0, %s115
      %s130 = sphi 0, %s116
      %s134 = sphi 0, %s134
      %s136 = sphi 0, %s134
      %s137 = sphi 0, %s136
      %s151 = sphi 0, %s137
      %s157 = sphi 0, %s159
      %s160 = sphi 0, %s157
      %s161 = sphi 0, %s160
      %s177 = sphi 0, %s161
    $region4: #{tpu_custom_call.1} parent=1 // loop_header_branch
      %19 = sbr.rel (%p17) target = $region8
    $region5: #{tpu_custom_call.1} parent=1 // loop_body
      %s21 = ssub.s32 %s16, 1
      %s22 = ssub.s32 %s16, 2
      %s23 = sadd.s32 %s16, 1
      %s24 = ssub.s32 %s16, %s23
      %p25 = scmp.eq.s32.totalorder %s24, 0
      %s27 = sadd.s32 %s26, 1
      %s28 = scalar_select %p25, %s26, %s27
      %p31 = pneg %p25
      %p32 = scmp.eq.s32.totalorder %s16, 1
      %p33 = por %p31, %p32
      %p34 = scmp.ne.s32.totalorder %s26, %s29
      %p35 = scmp.eq.s32.totalorder %s16, 0
      %p36 = por %p34, %p35
      %p37 = scmp.ne.s32.totalorder %s26, %s29
      %p38 = scmp.eq.s32.totalorder %s21, 1
      %p39 = por %p37, %p38
      %p40 = scmp.ne.s32.totalorder %s29, %s30
      %p41 = scmp.eq.s32.totalorder %s21, 0
      %p42 = por %p40, %p41
      %p43 = scmp.ne.s32.totalorder %s29, %s30
      %p44 = scmp.eq.s32.totalorder %s22, 1
      %p45 = por %p43, %p44
      %p47 = scmp.ne.s32.totalorder %s30, %s46
      %p48 = scmp.eq.s32.totalorder %s22, 0
      %p49 = por %p47, %p48
      %s51 = sadd.s32 %s50, 1
      %p54 = scmp.eq.s32.totalorder %s16, 1
      %p55 = scmp.ne.s32.totalorder %s50, %s52
      %p56 = scmp.eq.s32.totalorder %s16, 0
      %p57 = por %p55, %p56
      %p58 = scmp.ne.s32.totalorder %s50, %s52
      %p59 = scmp.eq.s32.totalorder %s21, 1
      %p60 = por %p58, %p59
      %p61 = scmp.ne.s32.totalorder %s52, %s53
      %p62 = scmp.eq.s32.totalorder %s21, 0
      %p63 = por %p61, %p62
      %p64 = scmp.ne.s32.totalorder %s52, %s53
      %p65 = scmp.eq.s32.totalorder %s22, 1
      %p66 = por %p64, %p65
      %p68 = scmp.ne.s32.totalorder %s53, %s67
      %p69 = scmp.eq.s32.totalorder %s22, 0
      %p70 = por %p68, %p69
      %s72 = sadd.s32 %s71, 1
      %p75 = scmp.eq.s32.totalorder %s16, 1
      %p76 = scmp.ne.s32.totalorder %s71, %s73
      %p77 = scmp.eq.s32.totalorder %s16, 0
      %p78 = por %p76, %p77
      %p79 = scmp.ne.s32.totalorder %s71, %s73
      %p80 = scmp.eq.s32.totalorder %s21, 1
      %p81 = por %p79, %p80
      %p82 = scmp.ne.s32.totalorder %s73, %s74
      %p83 = scmp.eq.s32.totalorder %s21, 0
      %p84 = por %p82, %p83
      %p85 = scmp.ne.s32.totalorder %s73, %s74
      %p86 = scmp.eq.s32.totalorder %s22, 1
      %p87 = por %p85, %p86
      %p89 = scmp.ne.s32.totalorder %s74, %s88
      %p90 = scmp.eq.s32.totalorder %s22, 0
      %p91 = por %p89, %p90
      %s93 = sadd.s32 %s92, 1
      %p96 = scmp.eq.s32.totalorder %s16, 1
      %p97 = scmp.ne.s32.totalorder %s92, %s94
      %p98 = scmp.eq.s32.totalorder %s16, 0
      %p99 = por %p97, %p98
      %p100 = scmp.ne.s32.totalorder %s92, %s94
      %p101 = scmp.eq.s32.totalorder %s21, 1
      %p102 = por %p100, %p101
      %p103 = scmp.ne.s32.totalorder %s94, %s95
      %p104 = scmp.eq.s32.totalorder %s21, 0
      %p105 = por %p103, %p104
      %p106 = scmp.ne.s32.totalorder %s94, %s95
      %p107 = scmp.eq.s32.totalorder %s22, 1
      %p108 = por %p106, %p107
      %p110 = scmp.ne.s32.totalorder %s95, %s109
      %p111 = scmp.eq.s32.totalorder %s22, 0
      %p112 = por %p110, %p111
      %s114 = sadd.s32 %s113, 1
      %p117 = scmp.eq.s32.totalorder %s16, 1
      %p118 = scmp.ne.s32.totalorder %s113, %s115
      %p119 = scmp.eq.s32.totalorder %s16, 0
      %p120 = por %p118, %p119
      %p121 = scmp.ne.s32.totalorder %s113, %s115
      %p122 = scmp.eq.s32.totalorder %s21, 1
      %p123 = por %p121, %p122
      %p124 = scmp.ne.s32.totalorder %s115, %s116
      %p125 = scmp.eq.s32.totalorder %s21, 0
      %p126 = por %p124, %p125
      %p127 = scmp.ne.s32.totalorder %s115, %s116
      %p128 = scmp.eq.s32.totalorder %s22, 1
      %p129 = por %p127, %p128
      %p131 = scmp.ne.s32.totalorder %s116, %s130
      %p132 = scmp.eq.s32.totalorder %s22, 0
      %p133 = por %p131, %p132
      %s135 = sadd.s32 %s134, 1
      %p138 = scmp.eq.s32.totalorder %s16, 1
      %p139 = scmp.ne.s32.totalorder %s134, %s136
      %p140 = scmp.eq.s32.totalorder %s16, 0
      %p141 = por %p139, %p140
      %p142 = scmp.ne.s32.totalorder %s134, %s136
      %p143 = scmp.eq.s32.totalorder %s21, 1
      %p144 = por %p142, %p143
      %p145 = scmp.ne.s32.totalorder %s136, %s137
      %p146 = scmp.eq.s32.totalorder %s21, 0
      %p147 = por %p145, %p146
      %p148 = scmp.ne.s32.totalorder %s136, %s137
      %p149 = scmp.eq.s32.totalorder %s22, 1
      %p150 = por %p148, %p149
      %p152 = scmp.ne.s32.totalorder %s137, %s151
      %p153 = scmp.eq.s32.totalorder %s22, 0
      %p154 = por %p152, %p153
      %s155 = ssub.s32 %s16, %s23
      %p156 = scmp.eq.s32.totalorder %s155, 0
      %s158 = sadd.s32 %s157, 1
      %s159 = scalar_select %p156, %s157, %s158
      %p162 = pneg %p156
      %p163 = scmp.eq.s32.totalorder %s16, 1
      %p164 = por %p162, %p163
      %p165 = scmp.ne.s32.totalorder %s157, %s160
      %p166 = scmp.eq.s32.totalorder %s16, 0
      %p167 = por %p165, %p166
      %p168 = scmp.ne.s32.totalorder %s157, %s160
      %p169 = scmp.eq.s32.totalorder %s21, 1
      %p170 = por %p168, %p169
      %p171 = scmp.ne.s32.totalorder %s160, %s161
      %p172 = scmp.eq.s32.totalorder %s21, 0
      %p173 = por %p171, %p172
      %p174 = scmp.ne.s32.totalorder %s160, %s161
      %p175 = scmp.eq.s32.totalorder %s22, 1
      %p176 = por %p174, %p175
      %p178 = scmp.ne.s32.totalorder %s161, %s177
      %p179 = scmp.eq.s32.totalorder %s22, 0
      %p180 = por %p178, %p179
      %p181 = scmp.le.s32.totalorder 1, %s16
      %p182 = scmp.lt.s32.totalorder %s16, 3
      %p183 = pnand %p181, %p182
      %p184 = pneg %p183
      // Predicated region
      $region9: #{tpu_custom_call.1} parent=5 // pred_check
        _
      $region10: #{tpu_custom_call.1} parent=5 // pred_check_branch
        %186 = sbr.rel (%p183) target = $region12
      $region11: #{tpu_custom_call.1} parent=5 // pred_region
        %s187 = ssub.s32 %s16, 1
        // Predicated region
        $region13: #{tpu_custom_call.1} parent=11 // pred_check
          %p188 = pneg %p63
        $region14: #{tpu_custom_call.1} parent=11 // pred_check_branch
          %190 = sbr.rel (%p188) target = $region16
        $region15: #{tpu_custom_call.1} parent=11 // pred_region
          _
        $region16: #{tpu_custom_call.1} parent=11 // pred_fallthru
          _
        // Predicated region
        $region17: #{tpu_custom_call.1} parent=11 // pred_check
          %p191 = pneg %p84
        $region18: #{tpu_custom_call.1} parent=11 // pred_check_branch
          %193 = sbr.rel (%p191) target = $region20
        $region19: #{tpu_custom_call.1} parent=11 // pred_region
          _
        $region20: #{tpu_custom_call.1} parent=11 // pred_fallthru
          _
        // Predicated region
        $region21: #{tpu_custom_call.1} parent=11 // pred_check
          %p194 = pneg %p105
        $region22: #{tpu_custom_call.1} parent=11 // pred_check_branch
          %196 = sbr.rel (%p194) target = $region24
        $region23: #{tpu_custom_call.1} parent=11 // pred_region
          %198 = vsyncadd [#allocation3], 0
          %s199 = sshll.u32 %s3, 4
          %s200 = int_to_ptr.hbm [resolvable:$true] %s199
          %s201 = sshll.u32 [#allocation2], 4
          %s202 = int_to_ptr.vmem [resolvable:$true] %s201
          %207 = dma.hbm_to_vmem [thread:$0]  %s200, 1536, %s202, [#allocation3], 128, 128, 8
        $region24: #{tpu_custom_call.1} parent=11 // pred_fallthru
          _
        // Predicated region
        $region25: #{tpu_custom_call.1} parent=11 // pred_check
          %p208 = pneg %p126
        $region26: #{tpu_custom_call.1} parent=11 // pred_check_branch
          %210 = sbr.rel (%p208) target = $region28
        $region27: #{tpu_custom_call.1} parent=11 // pred_region
          _
        $region28: #{tpu_custom_call.1} parent=11 // pred_fallthru
          _
        // Predicated region
        $region29: #{tpu_custom_call.1} parent=11 // pred_check
          %p211 = pneg %p147
        $region30: #{tpu_custom_call.1} parent=11 // pred_check_branch
          %213 = sbr.rel (%p211) target = $region32
        $region31: #{tpu_custom_call.1} parent=11 // pred_region
          _
        $region32: #{tpu_custom_call.1} parent=11 // pred_fallthru
          _
      $region12: #{tpu_custom_call.1} parent=5 // pred_fallthru
        _
      %p214 = scmp.lt.s32.totalorder %s16, 2
      // Predicated region
      $region33: #{tpu_custom_call.1} parent=5 // pred_check
        %p215 = pneg %p214
      $region34: #{tpu_custom_call.1} parent=5 // pred_check_branch
        %217 = sbr.rel (%p215) target = $region36
      $region35: #{tpu_custom_call.1} parent=5 // pred_region
        // Predicated region
        $region37: #{tpu_custom_call.1} parent=35 // pred_check
          %p218 = pneg %p36
        $region38: #{tpu_custom_call.1} parent=35 // pred_check_branch
          %220 = sbr.rel (%p218) target = $region40
        $region39: #{tpu_custom_call.1} parent=35 // pred_region
          %p221 = scmp.lt.s32.totalorder %s16, 1
          %s222 = scalar_select %p221, %s16, 1
          %s223 = smul.addr %s222, 8
          %s224 = scalar_lea.vmem %s0, %s223
        $region40: #{tpu_custom_call.1} parent=35 // pred_fallthru
          _
      $region36: #{tpu_custom_call.1} parent=5 // pred_fallthru
        _
      %p225 = scmp.le.s32.totalorder 1, %s16
      %p226 = scmp.lt.s32.totalorder %s16, 3
      %p227 = pnand %p225, %p226
      %p228 = pneg %p227
      // Predicated region
      $region41: #{tpu_custom_call.1} parent=5 // pred_check
        _
      $region42: #{tpu_custom_call.1} parent=5 // pred_check_branch
        %230 = sbr.rel (%p227) target = $region44
      $region43: #{tpu_custom_call.1} parent=5 // pred_region
        %s231 = ssub.s32 %s16, 1
        // Predicated region
        $region45: #{tpu_custom_call.1} parent=43 // pred_check
          %p232 = pneg %p105
        $region46: #{tpu_custom_call.1} parent=43 // pred_check_branch
          %234 = sbr.rel (%p232) target = $region48
        $region47: #{tpu_custom_call.1} parent=43 // pred_region
          %236 = dma.done [#allocation3], 1536
        $region48: #{tpu_custom_call.1} parent=43 // pred_fallthru
          _
        %p237 = scmp.lt.s32.totalorder %s21, 1
        %s238 = scalar_select %p237, %s21, 1
        %s239 = smul.addr %s238, 8
        %s240 = scalar_lea.vmem %s0, %s239
        %p241 = pneg %p42
        %p242 = pneg %p39
        %p243 = pneg %p63
        %p244 = pneg %p60
        %p245 = pneg %p84
        %p246 = pneg %p81
        %p247 = pneg %p105
        %p248 = pneg %p102
        %p249 = pneg %p126
        %p250 = pneg %p123
        %p251 = pneg %p147
        %p252 = pneg %p144
        %p253 = pneg %p173
        %p254 = pneg %p170
        %s255 = sand.u32 %s160, 1
        %s256 = scalar_lea.sflag [#allocation4], %s255
        %s257 = sand.u32 %s160, 1
        %s258 = smul.addr %s257, 8
        %s259 = scalar_lea.vmem [#allocation5], %s258
        %p260 = scmp.lt.s32.totalorder %s21, 1
        %s261 = scalar_select %p260, %s21, 1
        %s262 = smul.addr %s261, 8
        %s263 = scalar_lea.vmem %s0, %s262
        %v264 = vld [vmem:[%s263] sm:$0xff]
        %v265 = vld [vmem:[%s1] sm:$0xff]
        %v266 = vld [vmem:[%s1 + $0x8] sm:$0xff]
        %v267 = vld [vmem:[%s1 + $0x10] sm:$0xff]
        %v268 = vld [vmem:[%s1 + $0x18] sm:$0xff]
        %v269 = vld [vmem:[%s1 + $0x20] sm:$0xff]
        %v270 = vld [vmem:[%s1 + $0x28] sm:$0xff]
        %v271 = vld [vmem:[%s1 + $0x30] sm:$0xff]
        %v272 = vld [vmem:[%s1 + $0x38] sm:$0xff]
        %v273 = vld [vmem:[%s1 + $0x40] sm:$0xff]
        %v274 = vld [vmem:[%s1 + $0x48] sm:$0xff]
        %v275 = vld [vmem:[%s1 + $0x50] sm:$0xff]
        %v276 = vld [vmem:[%s1 + $0x58] sm:$0xff]
        %v277 = vld [vmem:[%s2] sm:$0x1]
        %v279 = vperm.slane %v277, 0
        %vm281 = vcmask 785408
        %v283 = vsel %vm281, %v264, 0
        %285 = vmatpush.msra.mxu0 0.0
        %286 = vmatpush.msra.mxu0 0.0
        %287 = vmatpush.msra.mxu0 0.0
        %288 = vmatpush.msra.mxu0 0.0
        %289 = vmatpush.msra.mxu0 %v276
        %290 = vmatpush.msra.mxu0 %v275
        %291 = vmatpush.msra.mxu0 %v274
        %292 = vmatpush.msra.mxu0 %v273
        %293 = vmatpush.msra.mxu0 %v272
        %294 = vmatpush.msra.mxu0 %v271
        %295 = vmatpush.msra.mxu0 %v270
        %296 = vmatpush.msra.mxu0 %v269
        %297 = vmatpush.msra.mxu0 %v268
        %298 = vmatpush.msra.mxu0 %v267
        %299 = vmatpush.msra.mxu0 %v266
        %300 = vmatpush.msra.mxu0 %v265
        %301 = vmatmul.f32.gmra.mxu0 %v283
        %v302 = vpop.f32.mrf.mxu0
        %v303 = vadd.f32 %v279, %v302
        %304 = vdwg.mxu0
        %v305 = vtanh.pop %v303
        %v306 = vsel %vm281, %v305, -inf
        %307 = vmax.xlane.f32.xlu0 %v306
        %v308 = vpop.xlane.xlu0 %307
        %v309 = vsub.f32 %v305, %v308
        %v310 = vmul.f32 %v309, 1.442695
        %v311 = vpow.pop %v310
        %v312 = vld [vmem:[#allocation2] sm:$0xff]
        %v313 = vld [vmem:[#allocation2 + $0x8] sm:$0xff]
        %v314 = vld [vmem:[#allocation2 + $0x10] sm:$0xff]
        %v315 = vld [vmem:[#allocation2 + $0x18] sm:$0xff]
        %v316 = vld [vmem:[#allocation2 + $0x20] sm:$0xff]
        %v317 = vld [vmem:[#allocation2 + $0x28] sm:$0xff]
        %v318 = vld [vmem:[#allocation2 + $0x30] sm:$0xff]
        %v319 = vld [vmem:[#allocation2 + $0x38] sm:$0xff]
        %v320 = vld [vmem:[#allocation2 + $0x40] sm:$0xff]
        %v321 = vld [vmem:[#allocation2 + $0x48] sm:$0xff]
        %v322 = vld [vmem:[#allocation2 + $0x50] sm:$0xff]
        %v323 = vld [vmem:[#allocation2 + $0x58] sm:$0xff]
        %v325 = vsel %vm281, %v311, 0
        %327 = vmatpush.msra.mxu0 0.0
        %328 = vmatpush.msra.mxu0 0.0
        %329 = vmatpush.msra.mxu0 0.0
        %330 = vmatpush.msra.mxu0 0.0
        %331 = vmatpush.msra.mxu0 %v323
        %332 = vmatpush.msra.mxu0 %v322
        %333 = vmatpush.msra.mxu0 %v321
        %334 = vmatpush.msra.mxu0 %v320
        %335 = vmatpush.msra.mxu0 %v319
        %336 = vmatpush.msra.mxu0 %v318
        %337 = vmatpush.msra.mxu0 %v317
        %338 = vmatpush.msra.mxu0 %v316
        %339 = vmatpush.msra.mxu0 %v315
        %340 = vmatpush.msra.mxu0 %v314
        %341 = vmatpush.msra.mxu0 %v313
        %342 = vmatpush.msra.mxu0 %v312
        %343 = vmatmul.f32.gmra.mxu0 %v325
        %v344 = vpop.f32.mrf.mxu0
        %v345 = vadd.f32 0.0, %v344
        %346 = vdwg.mxu0
        %v347 = vlog2.pop %v345
        %v348 = vmul.f32 %v347, 0.6931472
        %v349 = vsub.f32 %v309, %v348
        %v350 = vmul.f32 %v349, %v264
        %v351 = vld [vmem:[%s4] sm:$0xff]
        %v352 = vld [vmem:[%s4 + $0x8] sm:$0xff]
        %v353 = vld [vmem:[%s4 + $0x10] sm:$0xff]
        %v354 = vld [vmem:[%s4 + $0x18] sm:$0xff]
        %v355 = vld [vmem:[%s4 + $0x20] sm:$0xff]
        %v356 = vld [vmem:[%s4 + $0x28] sm:$0xff]
        %v357 = vld [vmem:[%s4 + $0x30] sm:$0xff]
        %v358 = vld [vmem:[%s4 + $0x38] sm:$0xff]
        %v359 = vld [vmem:[%s4 + $0x40] sm:$0xff]
        %v360 = vld [vmem:[%s4 + $0x48] sm:$0xff]
        %v361 = vld [vmem:[%s4 + $0x50] sm:$0xff]
        %v362 = vld [vmem:[%s4 + $0x58] sm:$0xff]
        %v363 = vld [vmem:[%s5] sm:$0x1]
        %v365 = vperm.slane %v363, 0
        %v368 = vsel %vm281, %v350, 0
        %370 = vmatpush.msra.mxu0 0.0
        %371 = vmatpush.msra.mxu0 0.0
        %372 = vmatpush.msra.mxu0 0.0
        %373 = vmatpush.msra.mxu0 0.0
        %374 = vmatpush.msra.mxu0 %v362
        %375 = vmatpush.msra.mxu0 %v361
        %376 = vmatpush.msra.mxu0 %v360
        %377 = vmatpush.msra.mxu0 %v359
        %378 = vmatpush.msra.mxu0 %v358
        %379 = vmatpush.msra.mxu0 %v357
        %380 = vmatpush.msra.mxu0 %v356
        %381 = vmatpush.msra.mxu0 %v355
        %382 = vmatpush.msra.mxu0 %v354
        %383 = vmatpush.msra.mxu0 %v353
        %384 = vmatpush.msra.mxu0 %v352
        %385 = vmatpush.msra.mxu0 %v351
        %386 = vmatmul.f32.gmra.mxu0 %v368
        %v387 = vpop.f32.mrf.mxu0
        %v388 = vadd.f32 %v365, %v387
        %389 = vdwg.mxu0
        %vm390 = vcmask 261120
        %v391 = vsel %vm390, %v388, -inf
        %392 = vmax.xlane.f32.xlu0 %v391
        %v393 = vpop.xlane.xlu0 %392
        %v394 = vsub.f32 %v388, %v393
        %v395 = vmul.f32 %v394, 1.442695
        %v396 = vpow.pop %v395
        %v397 = vsel %vm390, %v396, 0.0
        %398 = vadd.xlane.f32.xlu0 %v397
        %v399 = vpop.xlane.xlu0 %398
        %v400 = vlog2.pop %v399
        %v401 = vmul.f32 %v400, 0.6931472
        %v402 = vsub.f32 %v394, %v401
        %404 = vrot.lane.b32.xlu0 %v402, 96
        %v405 = vpop.permute.xlu0 %404
        %v407 = vsel %vm281, %v349, %v405
        %408 = vst [vmem:[%s259] sm:$0xff] %v407
        %s409 = sand.u32 %s160, 1
        %s410 = scalar_lea.sflag [#allocation4], %s409
        %s411 = sand.u32 %s160, 1
        %s412 = smul.addr %s411, 8
        %s413 = scalar_lea.vmem [#allocation5], %s412
        // Predicated region
        $region49: #{tpu_custom_call.1} parent=43 // pred_check
          %p414 = pneg %p170
        $region50: #{tpu_custom_call.1} parent=43 // pred_check_branch
          %416 = sbr.rel (%p414) target = $region52
        $region51: #{tpu_custom_call.1} parent=43 // pred_region
          %418 = vsyncadd %s410, 0
          %s419 = smul.addr %s21, 8
          %s420 = scalar_lea.hbm %s6, %s419
          %s422 = sshll.u32 %s413, 4
          %s423 = int_to_ptr.vmem [resolvable:$true] %s422
          %s424 = sshll.u32 %s420, 4
          %s425 = int_to_ptr.hbm [resolvable:$true] %s424
          %427 = dma.vmem_to_hbm [thread:$0]  %s423, 128, %s425, %s410
        $region52: #{tpu_custom_call.1} parent=43 // pred_fallthru
          _
      $region44: #{tpu_custom_call.1} parent=5 // pred_fallthru
        _
      %p428 = scmp.le.s32.totalorder 2, %s16
      // Predicated region
      $region53: #{tpu_custom_call.1} parent=5 // pred_check
        %p429 = pneg %p428
      $region54: #{tpu_custom_call.1} parent=5 // pred_check_branch
        %431 = sbr.rel (%p429) target = $region56
      $region55: #{tpu_custom_call.1} parent=5 // pred_region
        %s432 = ssub.s32 %s16, 2
        // Predicated region
        $region57: #{tpu_custom_call.1} parent=55 // pred_check
          %p433 = pneg %p176
        $region58: #{tpu_custom_call.1} parent=55 // pred_check_branch
          %435 = sbr.rel (%p433) target = $region60
        $region59: #{tpu_custom_call.1} parent=55 // pred_region
          %s436 = sand.u32 %s161, 1
          %s437 = scalar_lea.sflag [#allocation4], %s436
          %s438 = sand.u32 %s161, 1
          %s439 = smul.addr %s438, 8
          %s440 = scalar_lea.vmem [#allocation5], %s439
          %442 = dma.done %s437, 128
        $region60: #{tpu_custom_call.1} parent=55 // pred_fallthru
          _
      $region56: #{tpu_custom_call.1} parent=5 // pred_fallthru
        _
    $region6: #{tpu_custom_call.1} parent=1 // loop_footer
      %s20 = sadd.s32 1, %s16
    $region7: #{tpu_custom_call.1} parent=1 // loop_footer_branch
      %15 = sbr.rel target = $region3
    $region8: #{tpu_custom_call.1} parent=1 // loop_exit
      _
    %443 = vsyncpa [#allocation3], 1
    %s444 = scalar_lea.sflag [#allocation3], 1
    %445 = vsyncpa %s444, 1
    %446 = vsyncpa [#allocation4], 1
    %s447 = scalar_lea.sflag [#allocation4], 1
    %448 = vsyncpa %s447, 1

</llo_original>
